<compile_context>
chip_gen: v7x
topology: tpu7x:2x2x1
jax: 0.10.0
libtpu: 0.0.40
codegen_flags: <defaults>
</compile_context>

<pallas_src>
import jax
import jax.numpy as jnp
from jax.experimental import pallas as pl
from jax.experimental.pallas import tpu as pltpu


# ----------------------------------------------------------------------------
# Static config
# ----------------------------------------------------------------------------
CIN, COUT, KH, KW, STRIDE, PAD = 4, 8, 4, 4, 2, 1
H = W = 16
HO = (H + 2 * PAD - KH) // STRIDE + 1            # 8
WO = (W + 2 * PAD - KW) // STRIDE + 1            # 8
HW = HO * WO                                     # 64
K = CIN * KH * KW                                # 64 (im2col contraction length)
MLP = (COUT * HW, 64, 32)                        # (512, 64, 32)
REP = 16
RAND_INTENSITY = 0.5
N = 2                                            # batch size used in __main__

_VMEM = pl.BlockSpec(memory_space=pltpu.MemorySpace.VMEM)


# ----------------------------------------------------------------------------
# Single fused kernel: conv -> sigmoid -> BN -> flatten -> MLP -> heads -> reparam
# ----------------------------------------------------------------------------
def encoder_kernel(pt_ref, wcat_ref, w23_ref, s_ref, out_ref, flat_ref, ycm_ref):
    # pt   : (K, N*HW)        bf16  transposed im2col patches
    # wcat : (MLP0 + Cout, 64) bf16  rows [0:512]=w1 (flatten order), [512:520]=conv weight
    # w23  : (96, 32)          f32   rows [0:64]=w2, [64:96]=[w_mean | w_logvar]
    # s    : (8, 128)          f32   packed smalls: cb/gamma/beta cols 0..2, b1/b2/bh, eps
    # out  : (N, 3*REP)        f32   columns [mean | log_var | z]
    # flat : (N, 512) scratch, ycm : (Cout, N*HW) scratch
    n = flat_ref.shape[0]

    # ---- unpack the consolidated small-operand slab (static slices, no extra DMAs) ----
    cb = s_ref[:, 0:1]                               # (Cout, 1) conv bias
    g = s_ref[:, 1:2]                                # BN gamma
    beta = s_ref[:, 2:3]                             # BN beta
    b1 = s_ref[0:1, 8:8 + MLP[1]]                    # (1, 64)
    b2 = s_ref[1:2, 8:8 + MLP[2]]                    # (1, 32)
    bh = s_ref[2:3, 8:8 + 2 * REP]                   # (1, 32)
    eps = s_ref[0:n, 72:72 + REP]                    # (N, 16)

    w1 = wcat_ref[0:MLP[0], :]                       # (512, 64) bf16
    wct = wcat_ref[MLP[0]:MLP[0] + COUT, :]          # (8, 64)   bf16
    w2 = w23_ref[0:MLP[1], 0:MLP[2]]                 # (64, 32)  f32
    wh = w23_ref[MLP[1]:MLP[1] + MLP[2], 0:2 * REP]  # (32, 32)  f32

    # ---- Conv2d as ONE canonical (M,K)x(K,N) GEMM, channel-major lane-dense output ----
    y = jnp.dot(wct, pt_ref[...], preferred_element_type=jnp.float32) + cb   # (8, 128)
    y = 1.0 / (1.0 + jnp.exp(-y))                                            # Sigmoid

    # ---- BatchNorm2d (training-mode batch statistics, biased variance) ----
    # TODO(synk): eval-mode running_mean/running_var tracking is not represented here.
    cnt = float(n * HW)
    total = jnp.sum(y, axis=1, keepdims=True)                                # (8, 1)
    total_sq = jnp.sum(y * y, axis=1, keepdims=True)
    mean_c = total / cnt
    var_c = total_sq / cnt - mean_c * mean_c          # one-pass OK: sigmoid output in [0,1]
    scale = g * jax.lax.rsqrt(var_c + 1e-5)
    shift = beta - mean_c * scale
    ycm_ref[...] = y * scale + shift                                         # (8, 128)

    # ---- torch.flatten(start_dim=1): (Cout, n*HW) -> (n, Cout*HW) via aligned slice
    # copies through VMEM scratch (the single unavoidable re-layout in the network).
    for b in range(n):
        for c in range(COUT):
            flat_ref[b:b + 1, c * HW:(c + 1) * HW] = ycm_ref[c:c + 1, b * HW:(b + 1) * HW]

    # ---- MLP + fused mean|log_var head + reparameterization, batched over samples ----
    yf = flat_ref[...].astype(jnp.bfloat16)                                  # (N, 512)
    h = jnp.dot(yf, w1, preferred_element_type=jnp.float32) + b1             # (N, 64)
    h = jnp.maximum(h, 0.0)                                                  # ReLU
    h = jnp.dot(h, w2, preferred_element_type=jnp.float32) + b2              # (N, 32)
    h = jnp.maximum(h, 0.0)                                                  # ReLU (after last MLP layer too)
    mlv = jnp.dot(h, wh, preferred_element_type=jnp.float32) + bh            # (N, 32) = [mean | log_var]
    m = mlv[:, 0:REP]
    lv = mlv[:, REP:2 * REP]
    out_ref[:, 0:2 * REP] = mlv                                              # mean | log_var
    # reparameterization: z = mean + log_var * epsilon (matches the PyTorch module, which
    # multiplies by the log_var head output directly, not exp(0.5*log_var)).
    out_ref[:, 2 * REP:3 * REP] = m + lv * eps


def run_encoder(pt, wcat, w23, smalls, n):
    return pl.pallas_call(
        encoder_kernel,
        out_shape=jax.ShapeDtypeStruct((n, 3 * REP), jnp.float32),
        in_specs=[_VMEM, _VMEM, _VMEM, _VMEM],
        out_specs=_VMEM,
        scratch_shapes=[
            pltpu.VMEM((n, MLP[0]), jnp.float32),      # flattened activations (N, 512)
            pltpu.VMEM((COUT, n * HW), jnp.float32),   # BN'd conv activations (8, 128)
        ],
    )(pt, wcat, w23, smalls)


# ----------------------------------------------------------------------------
# Wrapper-side layout prep (cheap, fused by XLA)
# ----------------------------------------------------------------------------
def im2col_t(x):
    """(N, C, H, W) -> (C*KH*KW, N*Ho*Wo) transposed im2col patches (feature order c,kh,kw)."""
    n, c, h, w = x.shape
    xp = jnp.pad(x, ((0, 0), (0, 0), (PAD, PAD), (PAD, PAD)))
    cols = []
    for kh in range(KH):
        for kw in range(KW):
            cols.append(xp[:, :, kh:kh + STRIDE * HO:STRIDE, kw:kw + STRIDE * WO:STRIDE])
    p = jnp.stack(cols, axis=0).reshape(KH, KW, n, c, HO, WO)
    p = p.transpose(3, 0, 1, 2, 4, 5)                  # (C, KH, KW, N, Ho, Wo)
    return p.reshape(c * KH * KW, n * HO * WO)         # (64, N*64)


@jax.jit
def encoder_forward(x, params, eps):
    n = x.shape[0]
    pt = im2col_t(x).astype(jnp.bfloat16)              # bf16 GEMM operand (f32 accumulate)
    smalls = params["smalls_base"].at[0:n, 72:72 + REP].set(eps)
    out = run_encoder(pt, params["wcat"], params["w23"], smalls, n)
    mean_val = out[:, 0:REP]
    log_var_val = out[:, REP:2 * REP]
    z = out[:, 2 * REP:3 * REP]
    return z, mean_val, log_var_val


# ----------------------------------------------------------------------------
# Deterministic PyTorch-style init, pre-arranged in kernel-ready layouts
# ----------------------------------------------------------------------------
def uniform_init(key, shape, fan_in):
    bound = 1.0 / jnp.sqrt(float(fan_in))
    return jax.random.uniform(key, shape, jnp.float32, -bound, bound)


def make_params(key):
    keys = jax.random.split(key, 10)
    fan_c = CIN * KH * KW
    conv_w = uniform_init(keys[0], (COUT, CIN, KH, KW), fan_c)     # torch OIHW
    conv_b = uniform_init(keys[1], (COUT,), fan_c)
    w1 = uniform_init(keys[2], (MLP[0], MLP[1]), MLP[0])           # rows in torch flatten order
    b1 = uniform_init(keys[3], (MLP[1],), MLP[0])
    w2 = uniform_init(keys[4], (MLP[1], MLP[2]), MLP[1])
    b2 = uniform_init(keys[5], (MLP[2],), MLP[1])
    wm = uniform_init(keys[6], (MLP[2], REP), MLP[2])
    bm = uniform_init(keys[7], (REP,), MLP[2])
    wv = uniform_init(keys[8], (MLP[2], REP), MLP[2])
    bv = uniform_init(keys[9], (REP,), MLP[2])

    # Stacked bf16 GEMM weights: [w1 (512,64) ; conv weight as (Cout, Cin*KH*KW) (8,64)].
    wct = conv_w.reshape(COUT, K)
    wcat = jnp.concatenate([w1, wct], axis=0).astype(jnp.bfloat16)           # (520, 64)
    # Stacked f32 tail weights: [w2 (64,32) ; mean|log_var head (32,32)].
    w23 = jnp.concatenate([w2, jnp.concatenate([wm, wv], axis=1)], axis=0)   # (96, 32)

    # One (8,128) slab for all small vectors (epsilon is packed in per call by the wrapper).
    smalls = jnp.zeros((8, 128), jnp.float32)
    smalls = smalls.at[:, 0].set(conv_b)                                     # conv bias
    smalls = smalls.at[:, 1].set(jnp.ones((COUT,), jnp.float32))             # BN gamma
    smalls = smalls.at[:, 2].set(jnp.zeros((COUT,), jnp.float32))            # BN beta
    smalls = smalls.at[0, 8:8 + MLP[1]].set(b1)
    smalls = smalls.at[1, 8:8 + MLP[2]].set(b2)
    smalls = smalls.at[2, 8:8 + 2 * REP].set(jnp.concatenate([bm, bv]))
    return {"wcat": wcat, "w23": w23, "smalls_base": smalls}


if __name__ == "__main__":
    key = jax.random.PRNGKey(0)
    k_x, k_p, k_eps = jax.random.split(key, 3)

    x = jax.random.normal(k_x, (N, CIN, H, W), jnp.float32)
    params = make_params(k_p)
    # randomize=True: epsilon = randn_like(log_var) * rand_intensity
    eps = jax.random.normal(k_eps, (N, REP), jnp.float32) * RAND_INTENSITY

    z, mean_val, log_var_val = encoder_forward(x, params, eps)
    jax.block_until_ready((z, mean_val, log_var_val))

    assert z.shape == (N, REP)
    assert mean_val.shape == (N, REP)
    assert log_var_val.shape == (N, REP)
    assert bool(jnp.all(jnp.isfinite(z)))
    assert bool(jnp.all(jnp.isfinite(mean_val)))
    assert bool(jnp.all(jnp.isfinite(log_var_val)))
    print("KERNEL_OK")
</pallas_src>

<mosaic_0001>
module attributes {stable_mosaic.version = 11 : i64} {
  func.func @encoder_kernel(%arg0: memref<64x128xbf16, #tpu.memory_space<vmem>>, %arg1: memref<520x64xbf16, #tpu.memory_space<vmem>>, %arg2: memref<96x32xf32, #tpu.memory_space<vmem>>, %arg3: memref<8x128xf32, #tpu.memory_space<vmem>>, %arg4: memref<2x48xf32, #tpu.memory_space<vmem>>, %arg5: memref<2x512xf32, #tpu.memory_space<vmem>>, %arg6: memref<8x128xf32, #tpu.memory_space<vmem>>) attributes {dimension_semantics = [], scalar_prefetch = 0 : i64, scratch_operands = 2 : i64, tpu.core_type = #tpu.core_type<tc>} {
    %c0 = arith.constant 0 : index
    %c0_0 = arith.constant 0 : index
    %0 = vector.load %arg3[%c0, %c0_0] : memref<8x128xf32, #tpu.memory_space<vmem>>, vector<8x1xf32>
    %c0_1 = arith.constant 0 : index
    %c1 = arith.constant 1 : index
    %1 = vector.load %arg3[%c0_1, %c1] : memref<8x128xf32, #tpu.memory_space<vmem>>, vector<8x1xf32>
    %c0_2 = arith.constant 0 : index
    %c2 = arith.constant 2 : index
    %2 = vector.load %arg3[%c0_2, %c2] : memref<8x128xf32, #tpu.memory_space<vmem>>, vector<8x1xf32>
    %c0_3 = arith.constant 0 : index
    %c8 = arith.constant 8 : index
    %3 = vector.load %arg3[%c0_3, %c8] : memref<8x128xf32, #tpu.memory_space<vmem>>, vector<1x64xf32>
    %c1_4 = arith.constant 1 : index
    %c8_5 = arith.constant 8 : index
    %4 = vector.load %arg3[%c1_4, %c8_5] : memref<8x128xf32, #tpu.memory_space<vmem>>, vector<1x32xf32>
    %c2_6 = arith.constant 2 : index
    %c8_7 = arith.constant 8 : index
    %5 = vector.load %arg3[%c2_6, %c8_7] : memref<8x128xf32, #tpu.memory_space<vmem>>, vector<1x32xf32>
    %c0_8 = arith.constant 0 : index
    %c72 = arith.constant 72 : index
    %6 = vector.load %arg3[%c0_8, %c72] : memref<8x128xf32, #tpu.memory_space<vmem>>, vector<2x16xf32>
    %c0_9 = arith.constant 0 : index
    %c0_10 = arith.constant 0 : index
    %7 = vector.load %arg1[%c0_9, %c0_10] : memref<520x64xbf16, #tpu.memory_space<vmem>>, vector<512x64xbf16>
    %c512 = arith.constant 512 : index
    %c0_11 = arith.constant 0 : index
    %8 = vector.load %arg1[%c512, %c0_11] : memref<520x64xbf16, #tpu.memory_space<vmem>>, vector<8x64xbf16>
    %c0_12 = arith.constant 0 : index
    %c0_13 = arith.constant 0 : index
    %9 = vector.load %arg2[%c0_12, %c0_13] : memref<96x32xf32, #tpu.memory_space<vmem>>, vector<64x32xf32>
    %c64 = arith.constant 64 : index
    %c0_14 = arith.constant 0 : index
    %10 = vector.load %arg2[%c64, %c0_14] : memref<96x32xf32, #tpu.memory_space<vmem>>, vector<32x32xf32>
    %c0_15 = arith.constant 0 : index
    %c0_16 = arith.constant 0 : index
    %11 = vector.load %arg0[%c0_15, %c0_16] : memref<64x128xbf16, #tpu.memory_space<vmem>>, vector<64x128xbf16>
    %cst = arith.constant dense<0.000000e+00> : vector<8x128xf32>
    %12 = tpu.matmul %8, %11, %cst {dimension_numbers = #tpu.dot_dimension_numbers<[1], [0], [0], [1], [0, 0, 1, 1], [], []>} : vector<8x64xbf16>, vector<64x128xbf16>, vector<8x128xf32> -> vector<8x128xf32>
    %13 = vector.broadcast %0 : vector<8x1xf32> to vector<8x128xf32>
    %14 = arith.addf %12, %13 : vector<8x128xf32>
    %cst_17 = arith.constant 0.000000e+00 : f32
    %15 = vector.broadcast %cst_17 : f32 to vector<8x128xf32>
    %16 = arith.subf %15, %14 : vector<8x128xf32>
    %17 = math.exp %16 : vector<8x128xf32>
    %cst_18 = arith.constant 1.000000e+00 : f32
    %18 = vector.broadcast %cst_18 : f32 to vector<8x128xf32>
    %19 = arith.addf %18, %17 : vector<8x128xf32>
    %cst_19 = arith.constant 1.000000e+00 : f32
    %20 = vector.broadcast %cst_19 : f32 to vector<8x128xf32>
    %21 = arith.divf %20, %19 : vector<8x128xf32>
    %cst_20 = arith.constant dense<0.000000e+00> : vector<8xf32>
    %22 = vector.multi_reduction <add>, %21, %cst_20 [1] : vector<8x128xf32> to vector<8xf32>
    %23 = vector.shape_cast %22 : vector<8xf32> to vector<8x1xf32>
    %24 = arith.mulf %21, %21 : vector<8x128xf32>
    %cst_21 = arith.constant dense<0.000000e+00> : vector<8xf32>
    %25 = vector.multi_reduction <add>, %24, %cst_21 [1] : vector<8x128xf32> to vector<8xf32>
    %26 = vector.shape_cast %25 : vector<8xf32> to vector<8x1xf32>
    %cst_22 = arith.constant 1.280000e+02 : f32
    %27 = vector.broadcast %cst_22 : f32 to vector<8x1xf32>
    %28 = arith.divf %23, %27 : vector<8x1xf32>
    %cst_23 = arith.constant 1.280000e+02 : f32
    %29 = vector.broadcast %cst_23 : f32 to vector<8x1xf32>
    %30 = arith.divf %26, %29 : vector<8x1xf32>
    %31 = arith.mulf %28, %28 : vector<8x1xf32>
    %32 = arith.subf %30, %31 : vector<8x1xf32>
    %cst_24 = arith.constant 9.99999974E-6 : f32
    %33 = vector.broadcast %cst_24 : f32 to vector<8x1xf32>
    %34 = arith.addf %32, %33 : vector<8x1xf32>
    %35 = math.rsqrt %34 : vector<8x1xf32>
    %36 = arith.mulf %1, %35 : vector<8x1xf32>
    %37 = arith.mulf %28, %36 : vector<8x1xf32>
    %38 = arith.subf %2, %37 : vector<8x1xf32>
    %39 = vector.broadcast %36 : vector<8x1xf32> to vector<8x128xf32>
    %40 = arith.mulf %21, %39 : vector<8x128xf32>
    %41 = vector.broadcast %38 : vector<8x1xf32> to vector<8x128xf32>
    %42 = arith.addf %40, %41 : vector<8x128xf32>
    %c0_25 = arith.constant 0 : index
    %c0_26 = arith.constant 0 : index
    %43 = vector.load %arg6[%c0_25, %c0_26] : memref<8x128xf32, #tpu.memory_space<vmem>>, vector<8x128xf32>
    tpu.vector_store %arg6[%c0_25, %c0_26], %42 {strides = array<i32>} : memref<8x128xf32, #tpu.memory_space<vmem>>, vector<8x128xf32>,
    %c0_27 = arith.constant 0 : index
    %c0_28 = arith.constant 0 : index
    %44 = vector.load %arg6[%c0_27, %c0_28] : memref<8x128xf32, #tpu.memory_space<vmem>>, vector<1x64xf32>
    %c0_29 = arith.constant 0 : index
    %c0_30 = arith.constant 0 : index
    %45 = vector.load %arg5[%c0_29, %c0_30] : memref<2x512xf32, #tpu.memory_space<vmem>>, vector<1x64xf32>
    tpu.vector_store %arg5[%c0_29, %c0_30], %44 {strides = array<i32>} : memref<2x512xf32, #tpu.memory_space<vmem>>, vector<1x64xf32>,
    %c1_31 = arith.constant 1 : index
    %c0_32 = arith.constant 0 : index
    %46 = vector.load %arg6[%c1_31, %c0_32] : memref<8x128xf32, #tpu.memory_space<vmem>>, vector<1x64xf32>
    %c0_33 = arith.constant 0 : index
    %c64_34 = arith.constant 64 : index
    %47 = vector.load %arg5[%c0_33, %c64_34] : memref<2x512xf32, #tpu.memory_space<vmem>>, vector<1x64xf32>
    tpu.vector_store %arg5[%c0_33, %c64_34], %46 {strides = array<i32>} : memref<2x512xf32, #tpu.memory_space<vmem>>, vector<1x64xf32>,
    %c2_35 = arith.constant 2 : index
    %c0_36 = arith.constant 0 : index
    %48 = vector.load %arg6[%c2_35, %c0_36] : memref<8x128xf32, #tpu.memory_space<vmem>>, vector<1x64xf32>
    %c0_37 = arith.constant 0 : index
    %c128 = arith.constant 128 : index
    %49 = vector.load %arg5[%c0_37, %c128] : memref<2x512xf32, #tpu.memory_space<vmem>>, vector<1x64xf32>
    tpu.vector_store %arg5[%c0_37, %c128], %48 {strides = array<i32>} : memref<2x512xf32, #tpu.memory_space<vmem>>, vector<1x64xf32>,
    %c3 = arith.constant 3 : index
    %c0_38 = arith.constant 0 : index
    %50 = vector.load %arg6[%c3, %c0_38] : memref<8x128xf32, #tpu.memory_space<vmem>>, vector<1x64xf32>
    %c0_39 = arith.constant 0 : index
    %c192 = arith.constant 192 : index
    %51 = vector.load %arg5[%c0_39, %c192] : memref<2x512xf32, #tpu.memory_space<vmem>>, vector<1x64xf32>
    tpu.vector_store %arg5[%c0_39, %c192], %50 {strides = array<i32>} : memref<2x512xf32, #tpu.memory_space<vmem>>, vector<1x64xf32>,
    %c4 = arith.constant 4 : index
    %c0_40 = arith.constant 0 : index
    %52 = vector.load %arg6[%c4, %c0_40] : memref<8x128xf32, #tpu.memory_space<vmem>>, vector<1x64xf32>
    %c0_41 = arith.constant 0 : index
    %c256 = arith.constant 256 : index
    %53 = vector.load %arg5[%c0_41, %c256] : memref<2x512xf32, #tpu.memory_space<vmem>>, vector<1x64xf32>
    tpu.vector_store %arg5[%c0_41, %c256], %52 {strides = array<i32>} : memref<2x512xf32, #tpu.memory_space<vmem>>, vector<1x64xf32>,
    %c5 = arith.constant 5 : index
    %c0_42 = arith.constant 0 : index
    %54 = vector.load %arg6[%c5, %c0_42] : memref<8x128xf32, #tpu.memory_space<vmem>>, vector<1x64xf32>
    %c0_43 = arith.constant 0 : index
    %c320 = arith.constant 320 : index
    %55 = vector.load %arg5[%c0_43, %c320] : memref<2x512xf32, #tpu.memory_space<vmem>>, vector<1x64xf32>
    tpu.vector_store %arg5[%c0_43, %c320], %54 {strides = array<i32>} : memref<2x512xf32, #tpu.memory_space<vmem>>, vector<1x64xf32>,
    %c6 = arith.constant 6 : index
    %c0_44 = arith.constant 0 : index
    %56 = vector.load %arg6[%c6, %c0_44] : memref<8x128xf32, #tpu.memory_space<vmem>>, vector<1x64xf32>
    %c0_45 = arith.constant 0 : index
    %c384 = arith.constant 384 : index
    %57 = vector.load %arg5[%c0_45, %c384] : memref<2x512xf32, #tpu.memory_space<vmem>>, vector<1x64xf32>
    tpu.vector_store %arg5[%c0_45, %c384], %56 {strides = array<i32>} : memref<2x512xf32, #tpu.memory_space<vmem>>, vector<1x64xf32>,
    %c7 = arith.constant 7 : index
    %c0_46 = arith.constant 0 : index
    %58 = vector.load %arg6[%c7, %c0_46] : memref<8x128xf32, #tpu.memory_space<vmem>>, vector<1x64xf32>
    %c0_47 = arith.constant 0 : index
    %c448 = arith.constant 448 : index
    %59 = vector.load %arg5[%c0_47, %c448] : memref<2x512xf32, #tpu.memory_space<vmem>>, vector<1x64xf32>
    tpu.vector_store %arg5[%c0_47, %c448], %58 {strides = array<i32>} : memref<2x512xf32, #tpu.memory_space<vmem>>, vector<1x64xf32>,
    %c0_48 = arith.constant 0 : index
    %c64_49 = arith.constant 64 : index
    %60 = vector.load %arg6[%c0_48, %c64_49] : memref<8x128xf32, #tpu.memory_space<vmem>>, vector<1x64xf32>
    %c1_50 = arith.constant 1 : index
    %c0_51 = arith.constant 0 : index
    %61 = vector.load %arg5[%c1_50, %c0_51] : memref<2x512xf32, #tpu.memory_space<vmem>>, vector<1x64xf32>
    tpu.vector_store %arg5[%c1_50, %c0_51], %60 {strides = array<i32>} : memref<2x512xf32, #tpu.memory_space<vmem>>, vector<1x64xf32>,
    %c1_52 = arith.constant 1 : index
    %c64_53 = arith.constant 64 : index
    %62 = vector.load %arg6[%c1_52, %c64_53] : memref<8x128xf32, #tpu.memory_space<vmem>>, vector<1x64xf32>
    %c1_54 = arith.constant 1 : index
    %c64_55 = arith.constant 64 : index
    %63 = vector.load %arg5[%c1_54, %c64_55] : memref<2x512xf32, #tpu.memory_space<vmem>>, vector<1x64xf32>
    tpu.vector_store %arg5[%c1_54, %c64_55], %62 {strides = array<i32>} : memref<2x512xf32, #tpu.memory_space<vmem>>, vector<1x64xf32>,
    %c2_56 = arith.constant 2 : index
    %c64_57 = arith.constant 64 : index
    %64 = vector.load %arg6[%c2_56, %c64_57] : memref<8x128xf32, #tpu.memory_space<vmem>>, vector<1x64xf32>
    %c1_58 = arith.constant 1 : index
    %c128_59 = arith.constant 128 : index
    %65 = vector.load %arg5[%c1_58, %c128_59] : memref<2x512xf32, #tpu.memory_space<vmem>>, vector<1x64xf32>
    tpu.vector_store %arg5[%c1_58, %c128_59], %64 {strides = array<i32>} : memref<2x512xf32, #tpu.memory_space<vmem>>, vector<1x64xf32>,
    %c3_60 = arith.constant 3 : index
    %c64_61 = arith.constant 64 : index
    %66 = vector.load %arg6[%c3_60, %c64_61] : memref<8x128xf32, #tpu.memory_space<vmem>>, vector<1x64xf32>
    %c1_62 = arith.constant 1 : index
    %c192_63 = arith.constant 192 : index
    %67 = vector.load %arg5[%c1_62, %c192_63] : memref<2x512xf32, #tpu.memory_space<vmem>>, vector<1x64xf32>
    tpu.vector_store %arg5[%c1_62, %c192_63], %66 {strides = array<i32>} : memref<2x512xf32, #tpu.memory_space<vmem>>, vector<1x64xf32>,
    %c4_64 = arith.constant 4 : index
    %c64_65 = arith.constant 64 : index
    %68 = vector.load %arg6[%c4_64, %c64_65] : memref<8x128xf32, #tpu.memory_space<vmem>>, vector<1x64xf32>
    %c1_66 = arith.constant 1 : index
    %c256_67 = arith.constant 256 : index
    %69 = vector.load %arg5[%c1_66, %c256_67] : memref<2x512xf32, #tpu.memory_space<vmem>>, vector<1x64xf32>
    tpu.vector_store %arg5[%c1_66, %c256_67], %68 {strides = array<i32>} : memref<2x512xf32, #tpu.memory_space<vmem>>, vector<1x64xf32>,
    %c5_68 = arith.constant 5 : index
    %c64_69 = arith.constant 64 : index
    %70 = vector.load %arg6[%c5_68, %c64_69] : memref<8x128xf32, #tpu.memory_space<vmem>>, vector<1x64xf32>
    %c1_70 = arith.constant 1 : index
    %c320_71 = arith.constant 320 : index
    %71 = vector.load %arg5[%c1_70, %c320_71] : memref<2x512xf32, #tpu.memory_space<vmem>>, vector<1x64xf32>
    tpu.vector_store %arg5[%c1_70, %c320_71], %70 {strides = array<i32>} : memref<2x512xf32, #tpu.memory_space<vmem>>, vector<1x64xf32>,
    %c6_72 = arith.constant 6 : index
    %c64_73 = arith.constant 64 : index
    %72 = vector.load %arg6[%c6_72, %c64_73] : memref<8x128xf32, #tpu.memory_space<vmem>>, vector<1x64xf32>
    %c1_74 = arith.constant 1 : index
    %c384_75 = arith.constant 384 : index
    %73 = vector.load %arg5[%c1_74, %c384_75] : memref<2x512xf32, #tpu.memory_space<vmem>>, vector<1x64xf32>
    tpu.vector_store %arg5[%c1_74, %c384_75], %72 {strides = array<i32>} : memref<2x512xf32, #tpu.memory_space<vmem>>, vector<1x64xf32>,
    %c7_76 = arith.constant 7 : index
    %c64_77 = arith.constant 64 : index
    %74 = vector.load %arg6[%c7_76, %c64_77] : memref<8x128xf32, #tpu.memory_space<vmem>>, vector<1x64xf32>
    %c1_78 = arith.constant 1 : index
    %c448_79 = arith.constant 448 : index
    %75 = vector.load %arg5[%c1_78, %c448_79] : memref<2x512xf32, #tpu.memory_space<vmem>>, vector<1x64xf32>
    tpu.vector_store %arg5[%c1_78, %c448_79], %74 {strides = array<i32>} : memref<2x512xf32, #tpu.memory_space<vmem>>, vector<1x64xf32>,
    %c0_80 = arith.constant 0 : index
    %c0_81 = arith.constant 0 : index
    %76 = vector.load %arg5[%c0_80, %c0_81] : memref<2x512xf32, #tpu.memory_space<vmem>>, vector<2x512xf32>
    %77 = arith.truncf %76 : vector<2x512xf32> to vector<2x512xbf16>
    %cst_82 = arith.constant dense<0.000000e+00> : vector<2x64xf32>
    %78 = tpu.matmul %77, %7, %cst_82 {dimension_numbers = #tpu.dot_dimension_numbers<[1], [0], [0], [1], [0, 0, 1, 1], [], []>} : vector<2x512xbf16>, vector<512x64xbf16>, vector<2x64xf32> -> vector<2x64xf32>
    %79 = vector.broadcast %3 : vector<1x64xf32> to vector<2x64xf32>
    %80 = arith.addf %78, %79 : vector<2x64xf32>
    %cst_83 = arith.constant 0.000000e+00 : f32
    %81 = vector.broadcast %cst_83 : f32 to vector<2x64xf32>
    %82 = arith.maximumf %80, %81 : vector<2x64xf32>
    %cst_84 = arith.constant dense<0.000000e+00> : vector<2x32xf32>
    %83 = tpu.matmul %82, %9, %cst_84 {dimension_numbers = #tpu.dot_dimension_numbers<[1], [0], [0], [1], [0, 0, 1, 1], [], []>} : vector<2x64xf32>, vector<64x32xf32>, vector<2x32xf32> -> vector<2x32xf32>
    %84 = vector.broadcast %4 : vector<1x32xf32> to vector<2x32xf32>
    %85 = arith.addf %83, %84 : vector<2x32xf32>
    %cst_85 = arith.constant 0.000000e+00 : f32
    %86 = vector.broadcast %cst_85 : f32 to vector<2x32xf32>
    %87 = arith.maximumf %85, %86 : vector<2x32xf32>
    %cst_86 = arith.constant dense<0.000000e+00> : vector<2x32xf32>
    %88 = tpu.matmul %87, %10, %cst_86 {dimension_numbers = #tpu.dot_dimension_numbers<[1], [0], [0], [1], [0, 0, 1, 1], [], []>} : vector<2x32xf32>, vector<32x32xf32>, vector<2x32xf32> -> vector<2x32xf32>
    %89 = vector.broadcast %5 : vector<1x32xf32> to vector<2x32xf32>
    %90 = arith.addf %88, %89 : vector<2x32xf32>
    %91 = vector.extract_strided_slice %90 {offsets = [0, 0], sizes = [2, 16], strides = [1, 1]} : vector<2x32xf32> to vector<2x16xf32>
    %92 = vector.extract_strided_slice %90 {offsets = [0, 16], sizes = [2, 16], strides = [1, 1]} : vector<2x32xf32> to vector<2x16xf32>
    %c0_87 = arith.constant 0 : index
    %c0_88 = arith.constant 0 : index
    %93 = vector.load %arg4[%c0_87, %c0_88] : memref<2x48xf32, #tpu.memory_space<vmem>>, vector<2x32xf32>
    tpu.vector_store %arg4[%c0_87, %c0_88], %90 {strides = array<i32>} : memref<2x48xf32, #tpu.memory_space<vmem>>, vector<2x32xf32>,
    %94 = arith.mulf %92, %6 : vector<2x16xf32>
    %95 = arith.addf %91, %94 : vector<2x16xf32>
    %c0_89 = arith.constant 0 : index
    %c32 = arith.constant 32 : index
    %96 = vector.load %arg4[%c0_89, %c32] : memref<2x48xf32, #tpu.memory_space<vmem>>, vector<2x16xf32>
    tpu.vector_store %arg4[%c0_89, %c32], %95 {strides = array<i32>} : memref<2x48xf32, #tpu.memory_space<vmem>>, vector<2x16xf32>,
    return
  }
}

</mosaic_0001>

<llo_original>
// kernel: encoder_forward.1
$region0: #{encoder_forward.1}
  #allocation0 [shape = 'u32[]', space=smem, size = 0x4, offset = 0x4, fixed_abs, tag = 'smem constant byte address 0x4 - core index']
  #allocation1 [shape = 'u32[144,128]{1,0:T(1,128)}', space=vmem, size = 0x12000, scoped, tag = 'internal scratch']
  #allocation2 [shape = 'f32[2,512]{1,0:T(2,128)}', space=vmem, size = 0x1000, scoped, tag = 'scratch operand']
  #allocation3 [shape = 'f32[8,128]{1,0:T(8,128)}', space=vmem, size = 0x1000, scoped, tag = 'scratch operand']
  %s0 = inlined_call_operand.vmem [shape: bf16[64,128], index: 0, kind: input, shape index: {}]
  %s1 = inlined_call_operand.vmem [shape: bf16[520,64], index: 1, kind: input, shape index: {}]
  %s2 = inlined_call_operand.vmem [shape: f32[96,32], index: 2, kind: input, shape index: {}]
  %s3 = inlined_call_operand.vmem [shape: f32[8,128], index: 3, kind: input, shape index: {}]
  %s4 = inlined_call_operand.vmem [shape: f32[2,48], index: 4, kind: output, shape index: {}]
  %s5 = sld [smem:[#allocation0]]
  $region26: #{encoder_forward.1} parent=0
    _
  %s7 = ssub.s32 1, %s5
  %s8 = scalar_select 0, %s7, %s5
  // Predicated region
  $region2: #{encoder_forward.1} parent=0 // pred_check
    _
  $region3: #{encoder_forward.1} parent=0 // pred_check_branch
    %10 = sbr.rel (0) target = $region5
  $region4: #{encoder_forward.1} parent=0 // pred_region
    _
  $region5: #{encoder_forward.1} parent=0 // pred_fallthru
    _
  // Predicated region
  $region6: #{encoder_forward.1} parent=0 // pred_check
    _
  $region7: #{encoder_forward.1} parent=0 // pred_check_branch
    %12 = sbr.rel (0) target = $region9
  $region8: #{encoder_forward.1} parent=0 // pred_region
    _
  $region9: #{encoder_forward.1} parent=0 // pred_fallthru
    _
  // Predicated region
  $region10: #{encoder_forward.1} parent=0 // pred_check
    _
  $region11: #{encoder_forward.1} parent=0 // pred_check_branch
    %14 = sbr.rel (0) target = $region13
  $region12: #{encoder_forward.1} parent=0 // pred_region
    _
  $region13: #{encoder_forward.1} parent=0 // pred_fallthru
    _
  // Predicated region
  $region14: #{encoder_forward.1} parent=0 // pred_check
    _
  $region15: #{encoder_forward.1} parent=0 // pred_check_branch
    %16 = sbr.rel (0) target = $region17
  $region16: #{encoder_forward.1} parent=0 // pred_region
    _
  $region17: #{encoder_forward.1} parent=0 // pred_fallthru
    _
  %v18 = vld [vmem:[%s3] sm:$0xff]
  %v19 = vld [vmem:[%s3] sm:$0x1]
  %v20 = vld [vmem:[%s3 + $0x1] sm:$0x1]
  %v21 = vld [vmem:[%s3 + $0x2] sm:$0x1]
  %v22 = vld [vmem:[%s3] sm:$0x3]
  %v23 = vld [vmem:[%s1] sm:$0xf]
  %v24 = vld [vmem:[%s1 + $0x4] sm:$0xf]
  %v25 = vld [vmem:[%s1 + $0x8] sm:$0xf]
  %v26 = vld [vmem:[%s1 + $0xc] sm:$0xf]
  %v27 = vld [vmem:[%s1 + $0x10] sm:$0xf]
  %v28 = vld [vmem:[%s1 + $0x14] sm:$0xf]
  %v29 = vld [vmem:[%s1 + $0x18] sm:$0xf]
  %v30 = vld [vmem:[%s1 + $0x1c] sm:$0xf]
  %v31 = vld [vmem:[%s1 + $0x20] sm:$0xf]
  %v32 = vld [vmem:[%s1 + $0x24] sm:$0xf]
  %v33 = vld [vmem:[%s1 + $0x28] sm:$0xf]
  %v34 = vld [vmem:[%s1 + $0x2c] sm:$0xf]
  %v35 = vld [vmem:[%s1 + $0x30] sm:$0xf]
  %v36 = vld [vmem:[%s1 + $0x34] sm:$0xf]
  %v37 = vld [vmem:[%s1 + $0x38] sm:$0xf]
  %v38 = vld [vmem:[%s1 + $0x3c] sm:$0xf]
  %v39 = vld [vmem:[%s1 + $0x40] sm:$0xf]
  %v40 = vld [vmem:[%s1 + $0x44] sm:$0xf]
  %v41 = vld [vmem:[%s1 + $0x48] sm:$0xf]
  %v42 = vld [vmem:[%s1 + $0x4c] sm:$0xf]
  %v43 = vld [vmem:[%s1 + $0x50] sm:$0xf]
  %v44 = vld [vmem:[%s1 + $0x54] sm:$0xf]
  %v45 = vld [vmem:[%s1 + $0x58] sm:$0xf]
  %v46 = vld [vmem:[%s1 + $0x5c] sm:$0xf]
  %v47 = vld [vmem:[%s1 + $0x60] sm:$0xf]
  %v48 = vld [vmem:[%s1 + $0x64] sm:$0xf]
  %v49 = vld [vmem:[%s1 + $0x68] sm:$0xf]
  %v50 = vld [vmem:[%s1 + $0x6c] sm:$0xf]
  %v51 = vld [vmem:[%s1 + $0x70] sm:$0xf]
  %v52 = vld [vmem:[%s1 + $0x74] sm:$0xf]
  %v53 = vld [vmem:[%s1 + $0x78] sm:$0xf]
  %v54 = vld [vmem:[%s1 + $0x7c] sm:$0xf]
  %v55 = vld [vmem:[%s1 + $0x80] sm:$0xf]
  %v56 = vld [vmem:[%s1 + $0x84] sm:$0xf]
  %v57 = vld [vmem:[%s1 + $0x88] sm:$0xf]
  %v58 = vld [vmem:[%s1 + $0x8c] sm:$0xf]
  %v59 = vld [vmem:[%s1 + $0x90] sm:$0xf]
  %v60 = vld [vmem:[%s1 + $0x94] sm:$0xf]
  %v61 = vld [vmem:[%s1 + $0x98] sm:$0xf]
  %v62 = vld [vmem:[%s1 + $0x9c] sm:$0xf]
  %v63 = vld [vmem:[%s1 + $0xa0] sm:$0xf]
  %v64 = vld [vmem:[%s1 + $0xa4] sm:$0xf]
  %v65 = vld [vmem:[%s1 + $0xa8] sm:$0xf]
  %v66 = vld [vmem:[%s1 + $0xac] sm:$0xf]
  %v67 = vld [vmem:[%s1 + $0xb0] sm:$0xf]
  %v68 = vld [vmem:[%s1 + $0xb4] sm:$0xf]
  %v69 = vld [vmem:[%s1 + $0xb8] sm:$0xf]
  %v70 = vld [vmem:[%s1 + $0xbc] sm:$0xf]
  %v71 = vld [vmem:[%s1 + $0xc0] sm:$0xf]
  %v72 = vld [vmem:[%s1 + $0xc4] sm:$0xf]
  %v73 = vld [vmem:[%s1 + $0xc8] sm:$0xf]
  %v74 = vld [vmem:[%s1 + $0xcc] sm:$0xf]
  %v75 = vld [vmem:[%s1 + $0xd0] sm:$0xf]
  %v76 = vld [vmem:[%s1 + $0xd4] sm:$0xf]
  %v77 = vld [vmem:[%s1 + $0xd8] sm:$0xf]
  %v78 = vld [vmem:[%s1 + $0xdc] sm:$0xf]
  %v79 = vld [vmem:[%s1 + $0xe0] sm:$0xf]
  %v80 = vld [vmem:[%s1 + $0xe4] sm:$0xf]
  %v81 = vld [vmem:[%s1 + $0xe8] sm:$0xf]
  %v82 = vld [vmem:[%s1 + $0xec] sm:$0xf]
  %v83 = vld [vmem:[%s1 + $0xf0] sm:$0xf]
  %v84 = vld [vmem:[%s1 + $0xf4] sm:$0xf]
  %v85 = vld [vmem:[%s1 + $0xf8] sm:$0xf]
  %v86 = vld [vmem:[%s1 + $0xfc] sm:$0xf]
  %v87 = vld [vmem:[%s1 + $0x100] sm:$0xf]
  %v88 = vld [vmem:[%s2] sm:$0xff]
  %v89 = vld [vmem:[%s2 + $0x8] sm:$0xff]
  %v90 = vld [vmem:[%s2 + $0x10] sm:$0xff]
  %v91 = vld [vmem:[%s2 + $0x18] sm:$0xff]
  %v92 = vld [vmem:[%s2 + $0x20] sm:$0xff]
  %v93 = vld [vmem:[%s2 + $0x28] sm:$0xff]
  %v94 = vld [vmem:[%s2 + $0x30] sm:$0xff]
  %v95 = vld [vmem:[%s2 + $0x38] sm:$0xff]
  %v96 = vld [vmem:[%s2 + $0x40] sm:$0xff]
  %v97 = vld [vmem:[%s2 + $0x48] sm:$0xff]
  %v98 = vld [vmem:[%s2 + $0x50] sm:$0xff]
  %v99 = vld [vmem:[%s2 + $0x58] sm:$0xff]
  %v100 = vld [vmem:[%s0] sm:$0xf]
  %v101 = vld [vmem:[%s0 + $0x4] sm:$0xf]
  %v102 = vld [vmem:[%s0 + $0x8] sm:$0xf]
  %v103 = vld [vmem:[%s0 + $0xc] sm:$0xf]
  %v104 = vld [vmem:[%s0 + $0x10] sm:$0xf]
  %v105 = vld [vmem:[%s0 + $0x14] sm:$0xf]
  %v106 = vld [vmem:[%s0 + $0x18] sm:$0xf]
  %v107 = vld [vmem:[%s0 + $0x1c] sm:$0xf]
  %109 = vset.pattern.permute.xlu0 0
  %110 = vperm.xlu0 %109, %v18
  %v111 = vpop.permute.xlu0 %110
  %v121 = vunpack.c.l.b16 %v100
  %v122 = vunpack.c.l.b16 %v101
  %v123 = vunpack.c.l.b16 %v102
  %v124 = vunpack.c.l.b16 %v103
  %v125 = vunpack.c.l.b16 %v104
  %v126 = vunpack.c.l.b16 %v105
  %v127 = vunpack.c.l.b16 %v106
  %v128 = vunpack.c.l.b16 %v107
  %v129 = vpack.c.b16 %v122, %v121
  %v130 = vpack.c.b16 %v124, %v123
  %v131 = vpack.c.b16 %v126, %v125
  %v132 = vpack.c.b16 %v128, %v127
  %vm137 = vcmask 523264
  %v139 = vsel %vm137, %v87, 0
  %141 = vmatprep.subr.bf16.mxu0 0
  %142 = vmatpush1.bf16.msra.mxu0 %v129
  %143 = vmatprep.subr.bf16.mxu0 0
  %144 = vmatpush1.bf16.msra.mxu0 %v130
  %145 = vmatprep.subr.bf16.mxu0 0
  %146 = vmatpush1.bf16.msra.mxu0 %v131
  %147 = vmatprep.subr.bf16.mxu0 0
  %148 = vmatpush1.bf16.msra.mxu0 %v132
  %149 = vmatprep.subr.bf16.mxu0 0
  %150 = vmatpush1.bf16.msra.mxu0 0
  %151 = vmatprep.subr.bf16.mxu0 0
  %152 = vmatpush1.bf16.msra.mxu0 0
  %153 = vmatprep.subr.bf16.mxu0 0
  %154 = vmatpush1.bf16.msra.mxu0 0
  %155 = vmatprep.subr.bf16.mxu0 0
  %156 = vmatpush1.bf16.msra.mxu0 0
  %157 = vmatprep.subr.bf16.mxu0 0
  %158 = vmatpush1.bf16.msra.mxu0 0
  %159 = vmatprep.subr.bf16.mxu0 0
  %160 = vmatpush1.bf16.msra.mxu0 0
  %161 = vmatprep.subr.bf16.mxu0 0
  %162 = vmatpush1.bf16.msra.mxu0 0
  %163 = vmatprep.subr.bf16.mxu0 0
  %164 = vmatpush1.bf16.msra.mxu0 0
  %165 = vmatprep.subr.bf16.mxu0 0
  %166 = vmatpush1.bf16.msra.mxu0 0
  %167 = vmatprep.subr.bf16.mxu0 0
  %168 = vmatpush1.bf16.msra.mxu0 0
  %169 = vmatprep.subr.bf16.mxu0 0
  %170 = vmatpush1.bf16.msra.mxu0 0
  %171 = vmatprep.subr.bf16.mxu0 0
  %172 = vmatpush1.bf16.msra.mxu0 0
  %173 = vmatprep.mubr.bf16.mxu0 0
  %174 = vmatmul.mubr.bf16.gmra.mrb[0].mxu0 %v139
  %v175 = vpop.f32.mrb[0].mxu0
  %v176 = vadd.f32 %v111, %v175
  %v177 = vpop.f32.mrb[0].mxu0
  %v178 = vpop.f32.mrb[0].mxu0
  %v179 = vpop.f32.mrb[0].mxu0
  %180 = vdwg.mxu0
  %v181 = vsub.f32 0.0, %v176
  %v182 = vmul.f32 %v181, 1.442695
  %v183 = vpow.pop %v182
  %v184 = vadd.f32 %v183, 1.0
  %v185 = vrcp.pop %v184
  %v186 = vmul.f32 1.0, %v185
  %187 = vadd.xlane.f32.xlu0 %v186
  %v188 = vpop.xlane.xlu0 %187
  %v189 = vmul.f32 %v186, %v186
  %190 = vadd.xlane.f32.xlu0 %v189
  %v191 = vpop.xlane.xlu0 %190
  %v192 = vrcp.pop 128.0
  %v193 = vmul.f32 %v188, %v192
  %v194 = vmul.f32 %v191, %v192
  %v195 = vmul.f32 %v193, %v193
  %v196 = vsub.f32 %v194, %v195
  %v197 = vadd.f32 %v196, 1e-05
  %v198 = vrsqrt.pop %v197
  %v199 = vmul.f32 %v18, %v198
  %v200 = vmul.f32 %v193, %v199
  %202 = vrot.lane.b32.xlu0 %v200, 1
  %v203 = vpop.permute.xlu0 %202
  %v205 = vsub.f32 %v18, %v203
  %207 = vset.pattern.permute.xlu0 1
  %208 = vperm.xlu0 %207, %v199
  %v209 = vpop.permute.xlu0 %208
  %v211 = vmul.f32 %v186, %v209
  %213 = vset.pattern.permute.xlu0 2
  %214 = vperm.xlu0 %213, %v205
  %v215 = vpop.permute.xlu0 %214
  %v217 = vadd.f32 %v211, %v215
  %218 = vst [vmem:[#allocation3] sm:$0xff] %v217
  %v219 = vld [vmem:[#allocation3] sm:$0x1]
  %vm220 = vcmask 516096
  %221 = vst.msk [vmem:[#allocation2] sm:$0x1] %vm220, %v219
  %v222 = vld [vmem:[#allocation3 + $0x1] sm:$0x1]
  %v225 = vunpack.c.l.s4 1983009808
  %v226 = vunpack.c.0.s8 %v225
  %v227 = vlaneseq
  %v228 = vshrl.u32 %v227, 7
  %v229 = vsub.s32 %v226, %v228
  %v230 = vrot.slane %v222, %v229
  %231 = vrot.lane.b32.xlu0 %v230, 64
  %v232 = vpop.permute.xlu0 %231
  %vm234 = vcmask 1040896
  %235 = vst.msk [vmem:[#allocation2] sm:$0x1] %vm234, %v232
  %v236 = vld [vmem:[#allocation3 + $0x2] sm:$0x1]
  %237 = vst.msk [vmem:[#allocation2 + $0x2] sm:$0x1] %vm220, %v236
  %v238 = vld [vmem:[#allocation3 + $0x3] sm:$0x1]
  %v241 = vunpack.c.l.s4 1983009808
  %v242 = vunpack.c.0.s8 %v241
  %v243 = vlaneseq
  %v244 = vshrl.u32 %v243, 7
  %v245 = vsub.s32 %v242, %v244
  %v246 = vrot.slane %v238, %v245
  %247 = vrot.lane.b32.xlu0 %v246, 64
  %v248 = vpop.permute.xlu0 %247
  %250 = vst.msk [vmem:[#allocation2 + $0x2] sm:$0x1] %vm234, %v248
  %v251 = vld [vmem:[#allocation3 + $0x4] sm:$0x1]
  %252 = vst.msk [vmem:[#allocation2 + $0x4] sm:$0x1] %vm220, %v251
  %v253 = vld [vmem:[#allocation3 + $0x5] sm:$0x1]
  %v256 = vunpack.c.l.s4 1983009808
  %v257 = vunpack.c.0.s8 %v256
  %v258 = vlaneseq
  %v259 = vshrl.u32 %v258, 7
  %v260 = vsub.s32 %v257, %v259
  %v261 = vrot.slane %v253, %v260
  %262 = vrot.lane.b32.xlu0 %v261, 64
  %v263 = vpop.permute.xlu0 %262
  %265 = vst.msk [vmem:[#allocation2 + $0x4] sm:$0x1] %vm234, %v263
  %v266 = vld [vmem:[#allocation3 + $0x6] sm:$0x1]
  %267 = vst.msk [vmem:[#allocation2 + $0x6] sm:$0x1] %vm220, %v266
  %v268 = vld [vmem:[#allocation3 + $0x7] sm:$0x1]
  %v271 = vunpack.c.l.s4 1983009808
  %v272 = vunpack.c.0.s8 %v271
  %v273 = vlaneseq
  %v274 = vshrl.u32 %v273, 7
  %v275 = vsub.s32 %v272, %v274
  %v276 = vrot.slane %v268, %v275
  %277 = vrot.lane.b32.xlu0 %v276, 64
  %v278 = vpop.permute.xlu0 %277
  %280 = vst.msk [vmem:[#allocation2 + $0x6] sm:$0x1] %vm234, %v278
  %v281 = vld [vmem:[#allocation3] sm:$0x1]
  %v284 = vunpack.c.l.s4 1983009808
  %v285 = vunpack.c.0.s8 %v284
  %v286 = vlaneseq
  %v287 = vshrl.u32 %v286, 7
  %v288 = vsub.s32 %v285, %v287
  %v289 = vrot.slane %v281, %v288
  %290 = vrot.lane.b32.xlu0 %v289, 64
  %v291 = vpop.permute.xlu0 %290
  %293 = vst.msk [vmem:[#allocation2 + $0x1] sm:$0x1] %vm220, %v291
  %v294 = vld [vmem:[#allocation3 + $0x1] sm:$0x1]
  %295 = vst.msk [vmem:[#allocation2 + $0x1] sm:$0x1] %vm234, %v294
  %v296 = vld [vmem:[#allocation3 + $0x2] sm:$0x1]
  %v299 = vunpack.c.l.s4 1983009808
  %v300 = vunpack.c.0.s8 %v299
  %v301 = vlaneseq
  %v302 = vshrl.u32 %v301, 7
  %v303 = vsub.s32 %v300, %v302
  %v304 = vrot.slane %v296, %v303
  %305 = vrot.lane.b32.xlu0 %v304, 64
  %v306 = vpop.permute.xlu0 %305
  %308 = vst.msk [vmem:[#allocation2 + $0x3] sm:$0x1] %vm220, %v306
  %v309 = vld [vmem:[#allocation3 + $0x3] sm:$0x1]
  %310 = vst.msk [vmem:[#allocation2 + $0x3] sm:$0x1] %vm234, %v309
  %v311 = vld [vmem:[#allocation3 + $0x4] sm:$0x1]
  %v314 = vunpack.c.l.s4 1983009808
  %v315 = vunpack.c.0.s8 %v314
  %v316 = vlaneseq
  %v317 = vshrl.u32 %v316, 7
  %v318 = vsub.s32 %v315, %v317
  %v319 = vrot.slane %v311, %v318
  %320 = vrot.lane.b32.xlu0 %v319, 64
  %v321 = vpop.permute.xlu0 %320
  %323 = vst.msk [vmem:[#allocation2 + $0x5] sm:$0x1] %vm220, %v321
  %v324 = vld [vmem:[#allocation3 + $0x5] sm:$0x1]
  %325 = vst.msk [vmem:[#allocation2 + $0x5] sm:$0x1] %vm234, %v324
  %v326 = vld [vmem:[#allocation3 + $0x6] sm:$0x1]
  %v329 = vunpack.c.l.s4 1983009808
  %v330 = vunpack.c.0.s8 %v329
  %v331 = vlaneseq
  %v332 = vshrl.u32 %v331, 7
  %v333 = vsub.s32 %v330, %v332
  %v334 = vrot.slane %v326, %v333
  %335 = vrot.lane.b32.xlu0 %v334, 64
  %v336 = vpop.permute.xlu0 %335
  %338 = vst.msk [vmem:[#allocation2 + $0x7] sm:$0x1] %vm220, %v336
  %v339 = vld [vmem:[#allocation3 + $0x7] sm:$0x1]
  %340 = vst.msk [vmem:[#allocation2 + $0x7] sm:$0x1] %vm234, %v339
  %v341 = vld [vmem:[#allocation2] sm:$0xff]
  %v343 = vcombine.high %v341, %v341
  %v345 = vunpack.c.l.s4 1983009808
  %v346 = vunpack.c.0.s8 %v345
  %v347 = vlaneseq
  %v348 = vshrl.u32 %v347, 7
  %v349 = vsub.s32 %v346, %v348
  %v350 = vrot.slane %v341, %v349
  %v352 = vunpack.c.l.s4 1983009808
  %v353 = vunpack.c.0.s8 %v352
  %v354 = vlaneseq
  %v355 = vshrl.u32 %v354, 7
  %v356 = vsub.s32 %v353, %v355
  %v357 = vrot.slane %v343, %v356
  %v358 = vcombine.high %v350, %v350
  %v359 = vcombine.high %v357, %v357
  %v364 = vpack.c.bf16 %v350, %v350
  %v365 = vpack.c.bf16 %v358, %v358
  %v366 = vpack.c.bf16 %v357, %v357
  %v367 = vpack.c.bf16 %v359, %v359
  %v368 = vlaneseq
  %v369 = vshrl.u32 %v368, 7
  %v370 = vsub.s32 0, %v369
  %v371 = vrot.slane %v19, %v370
  %v436 = vunpack.c.l.b16 %v23
  %v437 = vunpack.c.l.b16 %v24
  %v438 = vunpack.c.l.b16 %v25
  %v439 = vunpack.c.l.b16 %v26
  %v440 = vunpack.c.l.b16 %v27
  %v441 = vunpack.c.l.b16 %v28
  %v442 = vunpack.c.l.b16 %v29
  %v443 = vunpack.c.l.b16 %v30
  %v444 = vunpack.c.l.b16 %v31
  %v445 = vunpack.c.l.b16 %v32
  %v446 = vunpack.c.l.b16 %v33
  %v447 = vunpack.c.l.b16 %v34
  %v448 = vunpack.c.l.b16 %v35
  %v449 = vunpack.c.l.b16 %v36
  %v450 = vunpack.c.l.b16 %v37
  %v451 = vunpack.c.l.b16 %v38
  %v452 = vunpack.c.l.b16 %v39
  %v453 = vunpack.c.l.b16 %v40
  %v454 = vunpack.c.l.b16 %v41
  %v455 = vunpack.c.l.b16 %v42
  %v456 = vunpack.c.l.b16 %v43
  %v457 = vunpack.c.l.b16 %v44
  %v458 = vunpack.c.l.b16 %v45
  %v459 = vunpack.c.l.b16 %v46
  %v460 = vunpack.c.l.b16 %v47
  %v461 = vunpack.c.l.b16 %v48
  %v462 = vunpack.c.l.b16 %v49
  %v463 = vunpack.c.l.b16 %v50
  %v464 = vunpack.c.l.b16 %v51
  %v465 = vunpack.c.l.b16 %v52
  %v466 = vunpack.c.l.b16 %v53
  %v467 = vunpack.c.l.b16 %v54
  %v468 = vunpack.c.l.b16 %v55
  %v469 = vunpack.c.l.b16 %v56
  %v470 = vunpack.c.l.b16 %v57
  %v471 = vunpack.c.l.b16 %v58
  %v472 = vunpack.c.l.b16 %v59
  %v473 = vunpack.c.l.b16 %v60
  %v474 = vunpack.c.l.b16 %v61
  %v475 = vunpack.c.l.b16 %v62
  %v476 = vunpack.c.l.b16 %v63
  %v477 = vunpack.c.l.b16 %v64
  %v478 = vunpack.c.l.b16 %v65
  %v479 = vunpack.c.l.b16 %v66
  %v480 = vunpack.c.l.b16 %v67
  %v481 = vunpack.c.l.b16 %v68
  %v482 = vunpack.c.l.b16 %v69
  %v483 = vunpack.c.l.b16 %v70
  %v484 = vunpack.c.l.b16 %v71
  %v485 = vunpack.c.l.b16 %v72
  %v486 = vunpack.c.l.b16 %v73
  %v487 = vunpack.c.l.b16 %v74
  %v488 = vunpack.c.l.b16 %v75
  %v489 = vunpack.c.l.b16 %v76
  %v490 = vunpack.c.l.b16 %v77
  %v491 = vunpack.c.l.b16 %v78
  %v492 = vunpack.c.l.b16 %v79
  %v493 = vunpack.c.l.b16 %v80
  %v494 = vunpack.c.l.b16 %v81
  %v495 = vunpack.c.l.b16 %v82
  %v496 = vunpack.c.l.b16 %v83
  %v497 = vunpack.c.l.b16 %v84
  %v498 = vunpack.c.l.b16 %v85
  %v499 = vunpack.c.l.b16 %v86
  %v500 = vpack.c.b16 %v437, %v436
  %v501 = vpack.c.b16 %v439, %v438
  %v502 = vpack.c.b16 %v441, %v440
  %v503 = vpack.c.b16 %v443, %v442
  %v504 = vpack.c.b16 %v445, %v444
  %v505 = vpack.c.b16 %v447, %v446
  %v506 = vpack.c.b16 %v449, %v448
  %v507 = vpack.c.b16 %v451, %v450
  %v508 = vpack.c.b16 %v453, %v452
  %v509 = vpack.c.b16 %v455, %v454
  %v510 = vpack.c.b16 %v457, %v456
  %v511 = vpack.c.b16 %v459, %v458
  %v512 = vpack.c.b16 %v461, %v460
  %v513 = vpack.c.b16 %v463, %v462
  %v514 = vpack.c.b16 %v465, %v464
  %v515 = vpack.c.b16 %v467, %v466
  %v516 = vpack.c.b16 %v469, %v468
  %v517 = vpack.c.b16 %v471, %v470
  %v518 = vpack.c.b16 %v473, %v472
  %v519 = vpack.c.b16 %v475, %v474
  %v520 = vpack.c.b16 %v477, %v476
  %v521 = vpack.c.b16 %v479, %v478
  %v522 = vpack.c.b16 %v481, %v480
  %v523 = vpack.c.b16 %v483, %v482
  %v524 = vpack.c.b16 %v485, %v484
  %v525 = vpack.c.b16 %v487, %v486
  %v526 = vpack.c.b16 %v489, %v488
  %v527 = vpack.c.b16 %v491, %v490
  %v528 = vpack.c.b16 %v493, %v492
  %v529 = vpack.c.b16 %v495, %v494
  %v530 = vpack.c.b16 %v497, %v496
  %v531 = vpack.c.b16 %v499, %v498
  %565 = vrot.lane.b32.xlu0 %v371, 120
  %v566 = vpop.permute.xlu0 %565
  %568 = vmatprep.subr.bf16.mxu0 0
  %569 = vmatpush1.bf16.msra.mxu0 %v500
  %570 = vmatprep.subr.bf16.mxu0 0
  %571 = vmatpush1.bf16.msra.mxu0 %v501
  %572 = vmatprep.subr.bf16.mxu0 0
  %573 = vmatpush1.bf16.msra.mxu0 %v502
  %574 = vmatprep.subr.bf16.mxu0 0
  %575 = vmatpush1.bf16.msra.mxu0 %v503
  %576 = vmatprep.subr.bf16.mxu0 0
  %577 = vmatpush1.bf16.msra.mxu0 %v504
  %578 = vmatprep.subr.bf16.mxu0 0
  %579 = vmatpush1.bf16.msra.mxu0 %v505
  %580 = vmatprep.subr.bf16.mxu0 0
  %581 = vmatpush1.bf16.msra.mxu0 %v506
  %582 = vmatprep.subr.bf16.mxu0 0
  %583 = vmatpush1.bf16.msra.mxu0 %v507
  %584 = vmatprep.subr.bf16.mxu0 0
  %585 = vmatpush1.bf16.msra.mxu0 %v508
  %586 = vmatprep.subr.bf16.mxu0 0
  %587 = vmatpush1.bf16.msra.mxu0 %v509
  %588 = vmatprep.subr.bf16.mxu0 0
  %589 = vmatpush1.bf16.msra.mxu0 %v510
  %590 = vmatprep.subr.bf16.mxu0 0
  %591 = vmatpush1.bf16.msra.mxu0 %v511
  %592 = vmatprep.subr.bf16.mxu0 0
  %593 = vmatpush1.bf16.msra.mxu0 %v512
  %594 = vmatprep.subr.bf16.mxu0 0
  %595 = vmatpush1.bf16.msra.mxu0 %v513
  %596 = vmatprep.subr.bf16.mxu0 0
  %597 = vmatpush1.bf16.msra.mxu0 %v514
  %598 = vmatprep.subr.bf16.mxu0 0
  %599 = vmatpush1.bf16.msra.mxu0 %v515
  %600 = vmatprep.mubr.bf16.mxu0 %v365
  %601 = vmatmul.mubr.bf16.gmra.mrb[0].mxu0 %v364
  %v602 = vpop.f32.mrb[0].mxu0
  %v603 = vadd.f32 %v566, %v602
  %v604 = vpop.f32.mrb[0].mxu0
  %v605 = vpop.f32.mrb[0].mxu0
  %v606 = vpop.f32.mrb[0].mxu0
  %607 = vdwg.mxu0
  %608 = vmatprep.subr.bf16.mxu0 0
  %609 = vmatpush1.bf16.msra.mxu0 %v516
  %610 = vmatprep.subr.bf16.mxu0 0
  %611 = vmatpush1.bf16.msra.mxu0 %v517
  %612 = vmatprep.subr.bf16.mxu0 0
  %613 = vmatpush1.bf16.msra.mxu0 %v518
  %614 = vmatprep.subr.bf16.mxu0 0
  %615 = vmatpush1.bf16.msra.mxu0 %v519
  %616 = vmatprep.subr.bf16.mxu0 0
  %617 = vmatpush1.bf16.msra.mxu0 %v520
  %618 = vmatprep.subr.bf16.mxu0 0
  %619 = vmatpush1.bf16.msra.mxu0 %v521
  %620 = vmatprep.subr.bf16.mxu0 0
  %621 = vmatpush1.bf16.msra.mxu0 %v522
  %622 = vmatprep.subr.bf16.mxu0 0
  %623 = vmatpush1.bf16.msra.mxu0 %v523
  %624 = vmatprep.subr.bf16.mxu0 0
  %625 = vmatpush1.bf16.msra.mxu0 %v524
  %626 = vmatprep.subr.bf16.mxu0 0
  %627 = vmatpush1.bf16.msra.mxu0 %v525
  %628 = vmatprep.subr.bf16.mxu0 0
  %629 = vmatpush1.bf16.msra.mxu0 %v526
  %630 = vmatprep.subr.bf16.mxu0 0
  %631 = vmatpush1.bf16.msra.mxu0 %v527
  %632 = vmatprep.subr.bf16.mxu0 0
  %633 = vmatpush1.bf16.msra.mxu0 %v528
  %634 = vmatprep.subr.bf16.mxu0 0
  %635 = vmatpush1.bf16.msra.mxu0 %v529
  %636 = vmatprep.subr.bf16.mxu0 0
  %637 = vmatpush1.bf16.msra.mxu0 %v530
  %638 = vmatprep.subr.bf16.mxu0 0
  %639 = vmatpush1.bf16.msra.mxu0 %v531
  %640 = vmatprep.mubr.bf16.mxu0 %v367
  %641 = vmatmul.mubr.bf16.gmra.mrb[0].mxu0 %v366
  %v642 = vpop.f32.mrb[0].mxu0
  %v643 = vadd.f32 %v603, %v642
  %v644 = vpop.f32.mrb[0].mxu0
  %v645 = vpop.f32.mrb[0].mxu0
  %v646 = vpop.f32.mrb[0].mxu0
  %647 = vdwg.mxu0
  %v648 = vmax.f32 %v643, 0.0
  %v649 = vlaneseq
  %v650 = vshrl.u32 %v649, 7
  %v651 = vsub.s32 0, %v650
  %v652 = vrot.slane %v20, %v651
  %654 = vrot.lane.b32.xlu0 %v652, 120
  %v655 = vpop.permute.xlu0 %654
  %v658 = vsel %vm137, %v648, 0
  %660 = vmatprep.subr.mxu0 0.0
  %661 = vmatpush1.msra.mxu0 %v88
  %662 = vmatprep.subr.mxu0 0.0
  %663 = vmatpush1.msra.mxu0 %v89
  %664 = vmatprep.subr.mxu0 0.0
  %665 = vmatpush1.msra.mxu0 %v90
  %666 = vmatprep.subr.mxu0 0.0
  %667 = vmatpush1.msra.mxu0 %v91
  %668 = vmatprep.subr.mxu0 0.0
  %669 = vmatpush1.msra.mxu0 %v92
  %670 = vmatprep.subr.mxu0 0.0
  %671 = vmatpush1.msra.mxu0 %v93
  %672 = vmatprep.subr.mxu0 0.0
  %673 = vmatpush1.msra.mxu0 %v94
  %674 = vmatprep.subr.mxu0 0.0
  %675 = vmatpush1.msra.mxu0 %v95
  %676 = vmatprep.subr.mxu0 0.0
  %677 = vmatpush1.msra.mxu0 0.0
  %678 = vmatprep.subr.mxu0 0.0
  %679 = vmatpush1.msra.mxu0 0.0
  %680 = vmatprep.subr.mxu0 0.0
  %681 = vmatpush1.msra.mxu0 0.0
  %682 = vmatprep.subr.mxu0 0.0
  %683 = vmatpush1.msra.mxu0 0.0
  %684 = vmatprep.subr.mxu0 0.0
  %685 = vmatpush1.msra.mxu0 0.0
  %686 = vmatprep.subr.mxu0 0.0
  %687 = vmatpush1.msra.mxu0 0.0
  %688 = vmatprep.subr.mxu0 0.0
  %689 = vmatpush1.msra.mxu0 0.0
  %690 = vmatprep.subr.mxu0 0.0
  %691 = vmatpush1.msra.mxu0 0.0
  %692 = vmatprep.subr.mxu0 0.0
  %693 = vmatpush1.msra.mxu0 0.0
  %694 = vmatprep.subr.mxu0 0.0
  %695 = vmatpush1.msra.mxu0 0.0
  %696 = vmatprep.subr.mxu0 0.0
  %697 = vmatpush1.msra.mxu0 0.0
  %698 = vmatprep.subr.mxu0 0.0
  %699 = vmatpush1.msra.mxu0 0.0
  %700 = vmatprep.subr.mxu0 0.0
  %701 = vmatpush1.msra.mxu0 0.0
  %702 = vmatprep.subr.mxu0 0.0
  %703 = vmatpush1.msra.mxu0 0.0
  %704 = vmatprep.subr.mxu0 0.0
  %705 = vmatpush1.msra.mxu0 0.0
  %706 = vmatprep.subr.mxu0 0.0
  %707 = vmatpush1.msra.mxu0 0.0
  %708 = vmatprep.subr.mxu0 0.0
  %709 = vmatpush1.msra.mxu0 0.0
  %710 = vmatprep.subr.mxu0 0.0
  %711 = vmatpush1.msra.mxu0 0.0
  %712 = vmatprep.subr.mxu0 0.0
  %713 = vmatpush1.msra.mxu0 0.0
  %714 = vmatprep.subr.mxu0 0.0
  %715 = vmatpush1.msra.mxu0 0.0
  %716 = vmatprep.subr.mxu0 0.0
  %717 = vmatpush1.msra.mxu0 0.0
  %718 = vmatprep.subr.mxu0 0.0
  %719 = vmatpush1.msra.mxu0 0.0
  %720 = vmatprep.subr.mxu0 0.0
  %721 = vmatpush1.msra.mxu0 0.0
  %722 = vmatprep.subr.mxu0 0.0
  %723 = vmatpush1.msra.mxu0 0.0
  %724 = vmatprep.mubr.f32.mxu0 0.0
  %725 = vmatmul.mubr.f32.gmra.mrb[0].mxu0 %v658
  %v726 = vpop.f32.mrb[0].mxu0
  %v727 = vadd.f32 %v655, %v726
  %v728 = vpop.f32.mrb[0].mxu0
  %729 = vdwg.mxu0
  %v730 = vmax.f32 %v727, 0.0
  %v731 = vlaneseq
  %v732 = vshrl.u32 %v731, 7
  %v733 = vsub.s32 0, %v732
  %v734 = vrot.slane %v21, %v733
  %736 = vrot.lane.b32.xlu0 %v734, 120
  %v737 = vpop.permute.xlu0 %736
  %vm739 = vcmask 261120
  %v741 = vsel %vm739, %v730, 0
  %743 = vmatprep.subr.mxu0 0.0
  %744 = vmatpush1.msra.mxu0 %v96
  %745 = vmatprep.subr.mxu0 0.0
  %746 = vmatpush1.msra.mxu0 %v97
  %747 = vmatprep.subr.mxu0 0.0
  %748 = vmatpush1.msra.mxu0 %v98
  %749 = vmatprep.subr.mxu0 0.0
  %750 = vmatpush1.msra.mxu0 %v99
  %751 = vmatprep.subr.mxu0 0.0
  %752 = vmatpush1.msra.mxu0 0.0
  %753 = vmatprep.subr.mxu0 0.0
  %754 = vmatpush1.msra.mxu0 0.0
  %755 = vmatprep.subr.mxu0 0.0
  %756 = vmatpush1.msra.mxu0 0.0
  %757 = vmatprep.subr.mxu0 0.0
  %758 = vmatpush1.msra.mxu0 0.0
  %759 = vmatprep.subr.mxu0 0.0
  %760 = vmatpush1.msra.mxu0 0.0
  %761 = vmatprep.subr.mxu0 0.0
  %762 = vmatpush1.msra.mxu0 0.0
  %763 = vmatprep.subr.mxu0 0.0
  %764 = vmatpush1.msra.mxu0 0.0
  %765 = vmatprep.subr.mxu0 0.0
  %766 = vmatpush1.msra.mxu0 0.0
  %767 = vmatprep.subr.mxu0 0.0
  %768 = vmatpush1.msra.mxu0 0.0
  %769 = vmatprep.subr.mxu0 0.0
  %770 = vmatpush1.msra.mxu0 0.0
  %771 = vmatprep.subr.mxu0 0.0
  %772 = vmatpush1.msra.mxu0 0.0
  %773 = vmatprep.subr.mxu0 0.0
  %774 = vmatpush1.msra.mxu0 0.0
  %775 = vmatprep.subr.mxu0 0.0
  %776 = vmatpush1.msra.mxu0 0.0
  %777 = vmatprep.subr.mxu0 0.0
  %778 = vmatpush1.msra.mxu0 0.0
  %779 = vmatprep.subr.mxu0 0.0
  %780 = vmatpush1.msra.mxu0 0.0
  %781 = vmatprep.subr.mxu0 0.0
  %782 = vmatpush1.msra.mxu0 0.0
  %783 = vmatprep.subr.mxu0 0.0
  %784 = vmatpush1.msra.mxu0 0.0
  %785 = vmatprep.subr.mxu0 0.0
  %786 = vmatpush1.msra.mxu0 0.0
  %787 = vmatprep.subr.mxu0 0.0
  %788 = vmatpush1.msra.mxu0 0.0
  %789 = vmatprep.subr.mxu0 0.0
  %790 = vmatpush1.msra.mxu0 0.0
  %791 = vmatprep.subr.mxu0 0.0
  %792 = vmatpush1.msra.mxu0 0.0
  %793 = vmatprep.subr.mxu0 0.0
  %794 = vmatpush1.msra.mxu0 0.0
  %795 = vmatprep.subr.mxu0 0.0
  %796 = vmatpush1.msra.mxu0 0.0
  %797 = vmatprep.subr.mxu0 0.0
  %798 = vmatpush1.msra.mxu0 0.0
  %799 = vmatprep.subr.mxu0 0.0
  %800 = vmatpush1.msra.mxu0 0.0
  %801 = vmatprep.subr.mxu0 0.0
  %802 = vmatpush1.msra.mxu0 0.0
  %803 = vmatprep.subr.mxu0 0.0
  %804 = vmatpush1.msra.mxu0 0.0
  %805 = vmatprep.subr.mxu0 0.0
  %806 = vmatpush1.msra.mxu0 0.0
  %807 = vmatprep.mubr.f32.mxu0 0.0
  %808 = vmatmul.mubr.f32.gmra.mrb[0].mxu0 %v741
  %v809 = vpop.f32.mrb[0].mxu0
  %v810 = vadd.f32 %v737, %v809
  %v811 = vpop.f32.mrb[0].mxu0
  %812 = vdwg.mxu0
  %vm813 = vcmask 254976
  %814 = vst.msk [vmem:[%s4] sm:$0x3] %vm813, %v810
  %816 = vrot.lane.b32.xlu0 %v22, 72
  %v817 = vpop.permute.xlu0 %816
  %v819 = vmul.f32 %v810, %v817
  %821 = vrot.lane.b32.xlu0 %v819, 112
  %v822 = vpop.permute.xlu0 %821
  %v824 = vadd.f32 %v810, %v822
  %826 = vrot.lane.b32.xlu0 %v824, 32
  %v827 = vpop.permute.xlu0 %826
  %vm829 = vcmask 386304
  %830 = vst.msk [vmem:[%s4] sm:$0x3] %vm829, %v827
  // Predicated region
  $region18: #{encoder_forward.1} parent=0 // pred_check
    _
  $region19: #{encoder_forward.1} parent=0 // pred_check_branch
    %832 = sbr.rel (0) target = $region21
  $region20: #{encoder_forward.1} parent=0 // pred_region
    _
  $region21: #{encoder_forward.1} parent=0 // pred_fallthru
    _
  // Predicated region
  $region22: #{encoder_forward.1} parent=0 // pred_check
    _
  $region23: #{encoder_forward.1} parent=0 // pred_check_branch
    %834 = sbr.rel (0) target = $region25
  $region24: #{encoder_forward.1} parent=0 // pred_region
    _
  $region25: #{encoder_forward.1} parent=0 // pred_fallthru
    _

</llo_original>
